<compile_context>
chip_gen: v7x
topology: tpu7x:2x2x1
jax: 0.10.0
libtpu: 0.0.40
codegen_flags: <defaults>
</compile_context>

<pallas_src>
import functools

import jax
import jax.numpy as jnp
from jax.experimental import pallas as pl
from jax.experimental.pallas import tpu as pltpu

VOCAB = 25          # 20 amino acids + specials
VOCAB_PAD = 32      # padded vocab for a sublane-friendly one-hot matmul
NUM_CLASSES = 3     # Q3: helix / sheet / coil
OUT_LANES = 128     # lane-dense logits width; sliced to NUM_CLASSES outside


def _ssp_kernel(tok_ref, pos_ref, emb_w_ref, b_in_ref, w_blk_ref, b_blk_ref,
                w_out_ref, b_out_ref, out_ref, *, seq_len, kernel_size,
                num_blocks):
    M = tok_ref.shape[0]
    K = kernel_size
    pad = K // 2

    # ---- embedding lookup fused with the 1x1 input conv: one-hot @ (E @ W_in) ----
    tok = tok_ref[...]                                               # (M, 1) i32
    vocab_iota = jax.lax.broadcasted_iota(jnp.int32, (M, VOCAB_PAD), 1)
    one_hot = (vocab_iota == tok).astype(jnp.bfloat16)               # (M, Vp) bf16
    h = jnp.dot(one_hot, emb_w_ref[...],
                preferred_element_type=jnp.float32) + b_in_ref[...]  # (M, C) f32

    # ---- per-tap validity masks, hoisted out of the block loop (depend only
    #      on position within the padded sequence, not on the block index) ----
    pos = pos_ref[...]                                               # (M, 1) i32
    valids = [jnp.logical_and(pos + (k - pad) >= 0, pos + (k - pad) < seq_len)
              for k in range(K)]

    # ---- residual conv blocks: in-kernel loop over resident weights ----
    def block_body(i, h):
        # im2col as a value: K masked sublane-rotations (XLU) concatenated on
        # the lane axis, then ONE fused (M, K*C) @ (K*C, C) MXU push.
        cols = []
        for k in range(K):
            d = k - pad
            shifted = h if d == 0 else pltpu.roll(h, shift=(-d) % M, axis=0)
            cols.append(jnp.where(valids[k], shifted, 0.0).astype(jnp.bfloat16))
        col = jnp.concatenate(cols, axis=1)                          # (M, K*C) bf16
        y = jnp.dot(col, w_blk_ref[i],
                    preferred_element_type=jnp.float32) + b_blk_ref[i]
        return h + jnp.maximum(y, 0.0)                               # residual + ReLU

    h = jax.lax.fori_loop(0, num_blocks, block_body, h,
                          unroll=(num_blocks <= 8))

    # ---- 1x1 output conv into a lane-dense 128-wide bf16 slab ----
    out_ref[...] = (jnp.dot(h.astype(jnp.bfloat16), w_out_ref[...],
                            preferred_element_type=jnp.float32)
                    + b_out_ref[...]).astype(out_ref.dtype)


def secondary_structure_predictor(tokens, params, *, num_blocks, kernel_size,
                                  m_target=1024):
    emb, w_in, b_in, w_blk, b_blk, w_out, b_out = params
    B, L = tokens.shape
    C = w_in.shape[1]
    K = kernel_size

    # --- tiling: pad L to a bf16-tile friendly multiple of 16 and pack Bt
    #     sequences per grid step so the matmul M dimension is ~1K rows. ---
    L_pad = ((L + 15) // 16) * 16
    Bt = max(1, min(B, pl.cdiv(m_target, L_pad)))
    if B >= 2:
        Bt = max(1, min(Bt, pl.cdiv(B, 2)))   # >= 2 batch tiles -> both v7x TCs busy

    def vmem_bytes(bt):
        m = bt * L_pad
        tile_io = 2 * (m * 4 + m * 4 + m * OUT_LANES * 2)       # tok + pos + bf16 out (x2 bufs)
        weights = 2 * (VOCAB_PAD * C * 2 + C * 4
                       + num_blocks * (K * C * C * 2 + C * 4)
                       + C * OUT_LANES * 2 + OUT_LANES * 4)
        working = m * C * 4 + m * K * C * 2 + m * VOCAB_PAD * 2  # h + im2col + one-hot
        return tile_io + weights + working

    # Keep the working set comfortably inside v7x's 64 MiB/TC VMEM.
    while Bt > 1 and vmem_bytes(Bt) > 24 * 1024 * 1024:
        Bt //= 2

    B_pad = pl.cdiv(B, Bt) * Bt
    n_btiles = B_pad // Bt
    M = Bt * L_pad

    tok_p = jnp.zeros((B_pad, L_pad), jnp.int32).at[:B, :L].set(
        tokens.astype(jnp.int32))
    tok_flat = tok_p.reshape(B_pad * L_pad, 1)
    pos = jnp.tile(jnp.arange(L_pad, dtype=jnp.int32), Bt).reshape(M, 1)

    # --- weights: fold emb @ W_in in f32 outside the kernel, bf16 MXU operands,
    #     f32 biases, conv taps flattened to (K*C, C) per block, lane-dense
    #     output projection padded to 128 lanes. ---
    emb_w = jnp.zeros((VOCAB_PAD, C), jnp.float32).at[:VOCAB].set(
        emb.astype(jnp.float32) @ w_in.astype(jnp.float32)).astype(jnp.bfloat16)
    b_in_f = b_in.reshape(1, C).astype(jnp.float32)
    w_blk_b = w_blk.reshape(num_blocks, K * C, C).astype(jnp.bfloat16)
    b_blk_f = b_blk.reshape(num_blocks, 1, C).astype(jnp.float32)
    w_out_p = jnp.zeros((C, OUT_LANES), jnp.bfloat16).at[:, :NUM_CLASSES].set(
        w_out.astype(jnp.bfloat16))
    b_out_p = jnp.zeros((1, OUT_LANES), jnp.float32).at[:, :NUM_CLASSES].set(
        b_out.reshape(1, NUM_CLASSES).astype(jnp.float32))

    kernel = functools.partial(_ssp_kernel, seq_len=L, kernel_size=K,
                               num_blocks=num_blocks)

    flops = 2 * B_pad * L_pad * (VOCAB_PAD * C + num_blocks * K * C * C
                                 + C * OUT_LANES)
    bytes_accessed = (tok_flat.size * 4 + pos.size * 4 + emb_w.size * 2
                      + b_in_f.size * 4 + w_blk_b.size * 2 + b_blk_f.size * 4
                      + w_out_p.size * 2 + b_out_p.size * 4
                      + B_pad * L_pad * OUT_LANES * 2)
    vmem_limit = int(min(64 * 1024 * 1024,
                         max(16 * 1024 * 1024, 2 * vmem_bytes(Bt))))

    out = pl.pallas_call(
        kernel,
        out_shape=jax.ShapeDtypeStruct((B_pad * L_pad, OUT_LANES), jnp.bfloat16),
        grid_spec=pltpu.PrefetchScalarGridSpec(
            num_scalar_prefetch=0,
            grid=(n_btiles,),
            in_specs=[
                pl.BlockSpec((M, 1), lambda bt: (bt, 0)),            # tokens (per tile)
                pl.BlockSpec((M, 1), lambda bt: (0, 0)),             # positions (resident)
                pl.BlockSpec(emb_w.shape, lambda bt: (0, 0)),        # emb @ W_in (resident)
                pl.BlockSpec(b_in_f.shape, lambda bt: (0, 0)),       # input bias
                pl.BlockSpec(w_blk_b.shape, lambda bt: (0, 0, 0)),   # all conv weights (resident)
                pl.BlockSpec(b_blk_f.shape, lambda bt: (0, 0, 0)),   # all conv biases
                pl.BlockSpec(w_out_p.shape, lambda bt: (0, 0)),      # output projection
                pl.BlockSpec(b_out_p.shape, lambda bt: (0, 0)),      # output bias
            ],
            out_specs=pl.BlockSpec((M, OUT_LANES), lambda bt: (bt, 0)),
        ),
        compiler_params=pltpu.CompilerParams(
            dimension_semantics=("parallel",),
            vmem_limit_bytes=vmem_limit,
        ),
        cost_estimate=pl.CostEstimate(flops=flops, transcendentals=0,
                                      bytes_accessed=bytes_accessed),
    )(tok_flat, pos, emb_w, b_in_f, w_blk_b, b_blk_f, w_out_p, b_out_p)

    return out.reshape(B_pad, L_pad, OUT_LANES)[:B, :L, :NUM_CLASSES].astype(
        jnp.float32)


def reference(tokens, params, *, num_blocks, kernel_size):
    """Pure-JAX f32 reference mirroring the PyTorch forward semantics."""
    emb, w_in, b_in, w_blk, b_blk, w_out, b_out = params
    B, L = tokens.shape
    pad = kernel_size // 2
    x = emb[tokens]                                   # (B, L, E)
    h = x @ w_in + b_in                               # (B, L, C)
    for blk in range(num_blocks):
        hp = jnp.pad(h, ((0, 0), (pad, pad), (0, 0)))
        y = sum(hp[:, k:k + L, :] @ w_blk[blk, k] for k in range(kernel_size))
        y = y + b_blk[blk]
        h = h + jax.nn.relu(y)
    return h @ w_out + b_out                          # (B, L, NUM_CLASSES)


def init_params(key, *, embed_dim, num_blocks, conv_dim, kernel_size):
    ks = jax.random.split(key, 5)
    emb = 0.1 * jax.random.normal(ks[0], (VOCAB, embed_dim), jnp.float32)
    w_in = 0.1 * jax.random.normal(ks[1], (embed_dim, conv_dim), jnp.float32)
    b_in = jnp.zeros((1, conv_dim), jnp.float32)
    w_blk = 0.1 * jax.random.normal(
        ks[2], (num_blocks, kernel_size, conv_dim, conv_dim), jnp.float32)
    b_blk = jnp.zeros((num_blocks, 1, conv_dim), jnp.float32)
    w_out = 0.1 * jax.random.normal(ks[3], (conv_dim, NUM_CLASSES), jnp.float32)
    b_out = jnp.zeros((1, NUM_CLASSES), jnp.float32)
    return emb, w_in, b_in, w_blk, b_blk, w_out, b_out


if __name__ == "__main__":
    embed_dim, num_blocks, conv_dim, kernel_size = 32, 2, 32, 3
    B, L = 2, 8

    key = jax.random.PRNGKey(0)
    k_tok, k_par = jax.random.split(key)
    tokens = jax.random.randint(k_tok, (B, L), 0, VOCAB, dtype=jnp.int32)
    params = init_params(k_par, embed_dim=embed_dim, num_blocks=num_blocks,
                         conv_dim=conv_dim, kernel_size=kernel_size)

    out = secondary_structure_predictor(tokens, params,
                                        num_blocks=num_blocks,
                                        kernel_size=kernel_size)
    out = jax.block_until_ready(out)

    ref = reference(tokens, params, num_blocks=num_blocks, kernel_size=kernel_size)
    assert out.shape == (B, L, NUM_CLASSES)
    # bf16 MXU operands / bf16 logits writeback with f32 accumulation.
    assert jnp.allclose(out, ref, rtol=2e-2, atol=2e-2), "mismatch vs JAX reference"
    print("KERNEL_OK")
</pallas_src>

<mosaic_0001>
module attributes {stable_mosaic.version = 11 : i64} {
  func.func @_ssp_kernel(%arg0: i32, %arg1: memref<16x1xi32, #tpu.memory_space<vmem>>, %arg2: memref<16x1xi32, #tpu.memory_space<vmem>>, %arg3: memref<32x32xbf16, #tpu.memory_space<vmem>>, %arg4: memref<1x32xf32, #tpu.memory_space<vmem>>, %arg5: memref<2x96x32xbf16, #tpu.memory_space<vmem>>, %arg6: memref<2x1x32xf32, #tpu.memory_space<vmem>>, %arg7: memref<32x128xbf16, #tpu.memory_space<vmem>>, %arg8: memref<1x128xf32, #tpu.memory_space<vmem>>, %arg9: memref<16x128xbf16, #tpu.memory_space<vmem>>) attributes {dimension_semantics = [#tpu.dimension_semantics<parallel>], iteration_bounds = array<i64: 2>, scalar_prefetch = 0 : i64, scratch_operands = 0 : i64, tpu.core_type = #tpu.core_type<tc>, window_params = [{transform_indices = @transform_0, window_bounds = array<i64: 16, 1>}, {pipeline_mode = #tpu.pipeline_mode<synchronous>, transform_indices = @transform_1, window_bounds = array<i64: 16, 1>}, {pipeline_mode = #tpu.pipeline_mode<synchronous>, transform_indices = @transform_2, window_bounds = array<i64: 32, 32>}, {pipeline_mode = #tpu.pipeline_mode<synchronous>, transform_indices = @transform_3, window_bounds = array<i64: 1, 32>}, {pipeline_mode = #tpu.pipeline_mode<synchronous>, transform_indices = @transform_4, window_bounds = array<i64: 2, 96, 32>}, {pipeline_mode = #tpu.pipeline_mode<synchronous>, transform_indices = @transform_5, window_bounds = array<i64: 2, 1, 32>}, {pipeline_mode = #tpu.pipeline_mode<synchronous>, transform_indices = @transform_6, window_bounds = array<i64: 32, 128>}, {pipeline_mode = #tpu.pipeline_mode<synchronous>, transform_indices = @transform_7, window_bounds = array<i64: 1, 128>}, {transform_indices = @transform_8, window_bounds = array<i64: 16, 128>}]} {
    %c0 = arith.constant 0 : index
    %c0_0 = arith.constant 0 : index
    %0 = vector.load %arg1[%c0, %c0_0] : memref<16x1xi32, #tpu.memory_space<vmem>>, vector<16x1xi32>
    %1 = tpu.iota {dimensions = array<i32: 1>} : vector<16x32xi32>
    %2 = vector.broadcast %0 : vector<16x1xi32> to vector<16x32xi32>
    %3 = arith.cmpi eq, %1, %2 : vector<16x32xi32>
    %4 = arith.extui %3 : vector<16x32xi1> to vector<16x32xi32>
    %5 = arith.sitofp %4 : vector<16x32xi32> to vector<16x32xf32>
    %6 = arith.truncf %5 : vector<16x32xf32> to vector<16x32xbf16>
    %c0_1 = arith.constant 0 : index
    %c0_2 = arith.constant 0 : index
    %7 = vector.load %arg3[%c0_1, %c0_2] : memref<32x32xbf16, #tpu.memory_space<vmem>>, vector<32x32xbf16>
    %cst = arith.constant dense<0.000000e+00> : vector<16x32xf32>
    %8 = tpu.matmul %6, %7, %cst {dimension_numbers = #tpu.dot_dimension_numbers<[1], [0], [0], [1], [0, 0, 1, 1], [], []>} : vector<16x32xbf16>, vector<32x32xbf16>, vector<16x32xf32> -> vector<16x32xf32>
    %c0_3 = arith.constant 0 : index
    %c0_4 = arith.constant 0 : index
    %9 = vector.load %arg4[%c0_3, %c0_4] : memref<1x32xf32, #tpu.memory_space<vmem>>, vector<1x32xf32>
    %10 = vector.broadcast %9 : vector<1x32xf32> to vector<16x32xf32>
    %11 = arith.addf %8, %10 : vector<16x32xf32>
    %c0_5 = arith.constant 0 : index
    %c0_6 = arith.constant 0 : index
    %12 = vector.load %arg2[%c0_5, %c0_6] : memref<16x1xi32, #tpu.memory_space<vmem>>, vector<16x1xi32>
    %c-1_i32 = arith.constant -1 : i32
    %13 = vector.broadcast %c-1_i32 : i32 to vector<16x1xi32>
    %14 = arith.addi %12, %13 : vector<16x1xi32>
    %c0_i32 = arith.constant 0 : i32
    %15 = vector.broadcast %c0_i32 : i32 to vector<16x1xi32>
    %16 = arith.cmpi sge, %14, %15 : vector<16x1xi32>
    %c-1_i32_7 = arith.constant -1 : i32
    %17 = vector.broadcast %c-1_i32_7 : i32 to vector<16x1xi32>
    %18 = arith.addi %12, %17 : vector<16x1xi32>
    %c8_i32 = arith.constant 8 : i32
    %19 = vector.broadcast %c8_i32 : i32 to vector<16x1xi32>
    %20 = arith.cmpi slt, %18, %19 : vector<16x1xi32>
    %21 = arith.andi %16, %20 : vector<16x1xi1>
    %c0_i32_8 = arith.constant 0 : i32
    %22 = vector.broadcast %c0_i32_8 : i32 to vector<16x1xi32>
    %23 = arith.addi %12, %22 : vector<16x1xi32>
    %c0_i32_9 = arith.constant 0 : i32
    %24 = vector.broadcast %c0_i32_9 : i32 to vector<16x1xi32>
    %25 = arith.cmpi sge, %23, %24 : vector<16x1xi32>
    %c0_i32_10 = arith.constant 0 : i32
    %26 = vector.broadcast %c0_i32_10 : i32 to vector<16x1xi32>
    %27 = arith.addi %12, %26 : vector<16x1xi32>
    %c8_i32_11 = arith.constant 8 : i32
    %28 = vector.broadcast %c8_i32_11 : i32 to vector<16x1xi32>
    %29 = arith.cmpi slt, %27, %28 : vector<16x1xi32>
    %30 = arith.andi %25, %29 : vector<16x1xi1>
    %c1_i32 = arith.constant 1 : i32
    %31 = vector.broadcast %c1_i32 : i32 to vector<16x1xi32>
    %32 = arith.addi %12, %31 : vector<16x1xi32>
    %c0_i32_12 = arith.constant 0 : i32
    %33 = vector.broadcast %c0_i32_12 : i32 to vector<16x1xi32>
    %34 = arith.cmpi sge, %32, %33 : vector<16x1xi32>
    %c1_i32_13 = arith.constant 1 : i32
    %35 = vector.broadcast %c1_i32_13 : i32 to vector<16x1xi32>
    %36 = arith.addi %12, %35 : vector<16x1xi32>
    %c8_i32_14 = arith.constant 8 : i32
    %37 = vector.broadcast %c8_i32_14 : i32 to vector<16x1xi32>
    %38 = arith.cmpi slt, %36, %37 : vector<16x1xi32>
    %39 = arith.andi %34, %38 : vector<16x1xi1>
    %c0_i32_15 = arith.constant 0 : i32
    %c1_i32_16 = arith.constant 1 : i32
    %40 = tpu.dynamic_rotate %11 by %c1_i32_16 dim 0 : vector<16x32xf32>, i32 -> vector<16x32xf32>
    %cst_17 = arith.constant 0.000000e+00 : f32
    %41 = vector.shape_cast %21 : vector<16x1xi1> to vector<16x1xi1>
    %42 = vector.broadcast %41 : vector<16x1xi1> to vector<16x32xi1>
    %43 = vector.broadcast %cst_17 : f32 to vector<16x32xf32>
    %44 = arith.select %42, %40, %43 : vector<16x32xi1>, vector<16x32xf32>
    %45 = arith.truncf %44 : vector<16x32xf32> to vector<16x32xbf16>
    %cst_18 = arith.constant 0.000000e+00 : f32
    %46 = vector.shape_cast %30 : vector<16x1xi1> to vector<16x1xi1>
    %47 = vector.broadcast %46 : vector<16x1xi1> to vector<16x32xi1>
    %48 = vector.broadcast %cst_18 : f32 to vector<16x32xf32>
    %49 = arith.select %47, %11, %48 : vector<16x32xi1>, vector<16x32xf32>
    %50 = arith.truncf %49 : vector<16x32xf32> to vector<16x32xbf16>
    %c15_i32 = arith.constant 15 : i32
    %51 = tpu.dynamic_rotate %11 by %c15_i32 dim 0 : vector<16x32xf32>, i32 -> vector<16x32xf32>
    %cst_19 = arith.constant 0.000000e+00 : f32
    %52 = vector.shape_cast %39 : vector<16x1xi1> to vector<16x1xi1>
    %53 = vector.broadcast %52 : vector<16x1xi1> to vector<16x32xi1>
    %54 = vector.broadcast %cst_19 : f32 to vector<16x32xf32>
    %55 = arith.select %53, %51, %54 : vector<16x32xi1>, vector<16x32xf32>
    %56 = arith.truncf %55 : vector<16x32xf32> to vector<16x32xbf16>
    %57 = tpu.concatenate %45, %50, %56 in 1 : vector<16x32xbf16>, vector<16x32xbf16>, vector<16x32xbf16> -> vector<16x96xbf16>
    %58 = arith.index_cast %c0_i32_15 : i32 to index
    %c0_20 = arith.constant 0 : index
    %c0_21 = arith.constant 0 : index
    %59 = vector.load %arg5[%58, %c0_20, %c0_21] : memref<2x96x32xbf16, #tpu.memory_space<vmem>>, vector<1x96x32xbf16>
    %60 = vector.shape_cast %59 : vector<1x96x32xbf16> to vector<96x32xbf16>
    %cst_22 = arith.constant dense<0.000000e+00> : vector<16x32xf32>
    %61 = tpu.matmul %57, %60, %cst_22 {dimension_numbers = #tpu.dot_dimension_numbers<[1], [0], [0], [1], [0, 0, 1, 1], [], []>} : vector<16x96xbf16>, vector<96x32xbf16>, vector<16x32xf32> -> vector<16x32xf32>
    %62 = arith.index_cast %c0_i32_15 : i32 to index
    %c0_23 = arith.constant 0 : index
    %c0_24 = arith.constant 0 : index
    %63 = vector.load %arg6[%62, %c0_23, %c0_24] : memref<2x1x32xf32, #tpu.memory_space<vmem>>, vector<1x1x32xf32>
    %64 = vector.shape_cast %63 : vector<1x1x32xf32> to vector<1x32xf32>
    %65 = vector.broadcast %64 : vector<1x32xf32> to vector<16x32xf32>
    %66 = arith.addf %61, %65 : vector<16x32xf32>
    %cst_25 = arith.constant 0.000000e+00 : f32
    %67 = vector.broadcast %cst_25 : f32 to vector<16x32xf32>
    %68 = arith.maximumf %66, %67 : vector<16x32xf32>
    %69 = arith.addf %11, %68 : vector<16x32xf32>
    %c1_i32_26 = arith.constant 1 : i32
    %c1_i32_27 = arith.constant 1 : i32
    %70 = tpu.dynamic_rotate %69 by %c1_i32_27 dim 0 : vector<16x32xf32>, i32 -> vector<16x32xf32>
    %cst_28 = arith.constant 0.000000e+00 : f32
    %71 = vector.shape_cast %21 : vector<16x1xi1> to vector<16x1xi1>
    %72 = vector.broadcast %71 : vector<16x1xi1> to vector<16x32xi1>
    %73 = vector.broadcast %cst_28 : f32 to vector<16x32xf32>
    %74 = arith.select %72, %70, %73 : vector<16x32xi1>, vector<16x32xf32>
    %75 = arith.truncf %74 : vector<16x32xf32> to vector<16x32xbf16>
    %cst_29 = arith.constant 0.000000e+00 : f32
    %76 = vector.shape_cast %30 : vector<16x1xi1> to vector<16x1xi1>
    %77 = vector.broadcast %76 : vector<16x1xi1> to vector<16x32xi1>
    %78 = vector.broadcast %cst_29 : f32 to vector<16x32xf32>
    %79 = arith.select %77, %69, %78 : vector<16x32xi1>, vector<16x32xf32>
    %80 = arith.truncf %79 : vector<16x32xf32> to vector<16x32xbf16>
    %c15_i32_30 = arith.constant 15 : i32
    %81 = tpu.dynamic_rotate %69 by %c15_i32_30 dim 0 : vector<16x32xf32>, i32 -> vector<16x32xf32>
    %cst_31 = arith.constant 0.000000e+00 : f32
    %82 = vector.shape_cast %39 : vector<16x1xi1> to vector<16x1xi1>
    %83 = vector.broadcast %82 : vector<16x1xi1> to vector<16x32xi1>
    %84 = vector.broadcast %cst_31 : f32 to vector<16x32xf32>
    %85 = arith.select %83, %81, %84 : vector<16x32xi1>, vector<16x32xf32>
    %86 = arith.truncf %85 : vector<16x32xf32> to vector<16x32xbf16>
    %87 = tpu.concatenate %75, %80, %86 in 1 : vector<16x32xbf16>, vector<16x32xbf16>, vector<16x32xbf16> -> vector<16x96xbf16>
    %88 = arith.index_cast %c1_i32_26 : i32 to index
    %c0_32 = arith.constant 0 : index
    %c0_33 = arith.constant 0 : index
    %89 = vector.load %arg5[%88, %c0_32, %c0_33] : memref<2x96x32xbf16, #tpu.memory_space<vmem>>, vector<1x96x32xbf16>
    %90 = vector.shape_cast %89 : vector<1x96x32xbf16> to vector<96x32xbf16>
    %cst_34 = arith.constant dense<0.000000e+00> : vector<16x32xf32>
    %91 = tpu.matmul %87, %90, %cst_34 {dimension_numbers = #tpu.dot_dimension_numbers<[1], [0], [0], [1], [0, 0, 1, 1], [], []>} : vector<16x96xbf16>, vector<96x32xbf16>, vector<16x32xf32> -> vector<16x32xf32>
    %92 = arith.index_cast %c1_i32_26 : i32 to index
    %c0_35 = arith.constant 0 : index
    %c0_36 = arith.constant 0 : index
    %93 = vector.load %arg6[%92, %c0_35, %c0_36] : memref<2x1x32xf32, #tpu.memory_space<vmem>>, vector<1x1x32xf32>
    %94 = vector.shape_cast %93 : vector<1x1x32xf32> to vector<1x32xf32>
    %95 = vector.broadcast %94 : vector<1x32xf32> to vector<16x32xf32>
    %96 = arith.addf %91, %95 : vector<16x32xf32>
    %cst_37 = arith.constant 0.000000e+00 : f32
    %97 = vector.broadcast %cst_37 : f32 to vector<16x32xf32>
    %98 = arith.maximumf %96, %97 : vector<16x32xf32>
    %99 = arith.addf %69, %98 : vector<16x32xf32>
    %c2_i32 = arith.constant 2 : i32
    %100 = arith.truncf %99 : vector<16x32xf32> to vector<16x32xbf16>
    %c0_38 = arith.constant 0 : index
    %c0_39 = arith.constant 0 : index
    %101 = vector.load %arg7[%c0_38, %c0_39] : memref<32x128xbf16, #tpu.memory_space<vmem>>, vector<32x128xbf16>
    %cst_40 = arith.constant dense<0.000000e+00> : vector<16x128xf32>
    %102 = tpu.matmul %100, %101, %cst_40 {dimension_numbers = #tpu.dot_dimension_numbers<[1], [0], [0], [1], [0, 0, 1, 1], [], []>} : vector<16x32xbf16>, vector<32x128xbf16>, vector<16x128xf32> -> vector<16x128xf32>
    %c0_41 = arith.constant 0 : index
    %c0_42 = arith.constant 0 : index
    %103 = vector.load %arg8[%c0_41, %c0_42] : memref<1x128xf32, #tpu.memory_space<vmem>>, vector<1x128xf32>
    %104 = vector.broadcast %103 : vector<1x128xf32> to vector<16x128xf32>
    %105 = arith.addf %102, %104 : vector<16x128xf32>
    %106 = arith.truncf %105 : vector<16x128xf32> to vector<16x128xbf16>
    %c0_43 = arith.constant 0 : index
    %c0_44 = arith.constant 0 : index
    %107 = vector.load %arg9[%c0_43, %c0_44] : memref<16x128xbf16, #tpu.memory_space<vmem>>, vector<16x128xbf16>
    tpu.vector_store %arg9[%c0_43, %c0_44], %106 {strides = array<i32>} : memref<16x128xbf16, #tpu.memory_space<vmem>>, vector<16x128xbf16>,
    return
  }
  func.func @transform_0(%arg0: i32) -> (i32, i32) {
    %c0_i32 = arith.constant 0 : i32
    %c0_i32_0 = arith.constant 0 : i32
    return %arg0, %c0_i32 : i32, i32
  }
  func.func @transform_1(%arg0: i32) -> (i32, i32) {
    %c0_i32 = arith.constant 0 : i32
    %c0_i32_0 = arith.constant 0 : i32
    %c0_i32_1 = arith.constant 0 : i32
    return %c0_i32, %c0_i32_0 : i32, i32
  }
  func.func @transform_2(%arg0: i32) -> (i32, i32) {
    %c0_i32 = arith.constant 0 : i32
    %c0_i32_0 = arith.constant 0 : i32
    %c0_i32_1 = arith.constant 0 : i32
    return %c0_i32, %c0_i32_0 : i32, i32
  }
  func.func @transform_3(%arg0: i32) -> (i32, i32) {
    %c0_i32 = arith.constant 0 : i32
    %c0_i32_0 = arith.constant 0 : i32
    %c0_i32_1 = arith.constant 0 : i32
    return %c0_i32, %c0_i32_0 : i32, i32
  }
  func.func @transform_4(%arg0: i32) -> (i32, i32, i32) {
    %c0_i32 = arith.constant 0 : i32
    %c0_i32_0 = arith.constant 0 : i32
    %c0_i32_1 = arith.constant 0 : i32
    %c0_i32_2 = arith.constant 0 : i32
    return %c0_i32, %c0_i32_0, %c0_i32_1 : i32, i32, i32
  }
  func.func @transform_5(%arg0: i32) -> (i32, i32, i32) {
    %c0_i32 = arith.constant 0 : i32
    %c0_i32_0 = arith.constant 0 : i32
    %c0_i32_1 = arith.constant 0 : i32
    %c0_i32_2 = arith.constant 0 : i32
    return %c0_i32, %c0_i32_0, %c0_i32_1 : i32, i32, i32
  }
  func.func @transform_6(%arg0: i32) -> (i32, i32) {
    %c0_i32 = arith.constant 0 : i32
    %c0_i32_0 = arith.constant 0 : i32
    %c0_i32_1 = arith.constant 0 : i32
    return %c0_i32, %c0_i32_0 : i32, i32
  }
  func.func @transform_7(%arg0: i32) -> (i32, i32) {
    %c0_i32 = arith.constant 0 : i32
    %c0_i32_0 = arith.constant 0 : i32
    %c0_i32_1 = arith.constant 0 : i32
    return %c0_i32, %c0_i32_0 : i32, i32
  }
  func.func @transform_8(%arg0: i32) -> (i32, i32) {
    %c0_i32 = arith.constant 0 : i32
    %c0_i32_0 = arith.constant 0 : i32
    return %arg0, %c0_i32 : i32, i32
  }
}

</mosaic_0001>

<llo_original>
// kernel: tpu_custom_call.1
$region0: #{tpu_custom_call.1}
  #allocation0 [shape = 'u32[]', space=smem, size = 0x4, offset = 0x4, fixed_abs, tag = 'smem constant byte address 0x4 - core index']
  #allocation1 [shape = 'u32[144,128]{1,0:T(1,128)}', space=vmem, size = 0x12000, scoped, tag = 'internal scratch']
  %s0 = inlined_call_operand.vmem [shape: s32[32,1], index: 0, kind: input, shape index: {}]
  %s1 = inlined_call_operand.vmem [shape: s32[16,1], index: 1, kind: input, shape index: {}]
  %s2 = inlined_call_operand.vmem [shape: bf16[32,32], index: 2, kind: input, shape index: {}]
  %s3 = inlined_call_operand.vmem [shape: f32[1,32], index: 3, kind: input, shape index: {}]
  %s4 = inlined_call_operand.vmem [shape: bf16[2,96,32], index: 4, kind: input, shape index: {}]
  %s5 = inlined_call_operand.vmem [shape: f32[2,1,32], index: 5, kind: input, shape index: {}]
  %s6 = inlined_call_operand.vmem [shape: bf16[32,128], index: 6, kind: input, shape index: {}]
  %s7 = inlined_call_operand.vmem [shape: f32[1,128], index: 7, kind: input, shape index: {}]
  %s8 = inlined_call_operand.hbm [shape: bf16[32,128], index: 8, kind: output, shape index: {}]
  %s9 = sld [smem:[#allocation0]]
  $region65: #{tpu_custom_call.1} parent=0
    _
  %s11 = ssub.s32 1, %s9
  %s12 = scalar_select 0, %s11, %s9
  $region1: #{tpu_custom_call.1} parent=0
    #allocation2 [shape = 'u8[8192]{0}', space=vmem, size = 0x2000, scoped, tag = 'output window, operand 0']
    #allocation3 [shape = 's32[2]{0}', space=sflag, size = 0x8, scoped, tag = 'scoped memory for tpu_custom_call.1']
    %13 = vsyncpa [#allocation3], 0
    %s14 = scalar_lea.sflag [#allocation3], 1
    %15 = vsyncpa %s14, 0
    loop: start=0, step=1, limit=4
    $region2: #{tpu_custom_call.1} parent=1 // loop_pre_header
      _
    $region3: #{tpu_custom_call.1} parent=1 // loop_header
      %s17 = sphi 0, %s21
      %p18 = scmp.ge.s32.totalorder %s17, 4
      %s27 = sphi 0, %s29
      %s30 = sphi 0, %s27
      %s31 = sphi 0, %s30
      %s47 = sphi 0, %s31
      %s51 = sphi 0, %s51
      %s53 = sphi 0, %s51
      %s54 = sphi 0, %s53
      %s68 = sphi 0, %s54
      %s72 = sphi 0, %s72
      %s74 = sphi 0, %s72
      %s75 = sphi 0, %s74
      %s89 = sphi 0, %s75
      %s93 = sphi 0, %s93
      %s95 = sphi 0, %s93
      %s96 = sphi 0, %s95
      %s110 = sphi 0, %s96
      %s114 = sphi 0, %s114
      %s116 = sphi 0, %s114
      %s117 = sphi 0, %s116
      %s131 = sphi 0, %s117
      %s135 = sphi 0, %s135
      %s137 = sphi 0, %s135
      %s138 = sphi 0, %s137
      %s152 = sphi 0, %s138
      %s156 = sphi 0, %s156
      %s158 = sphi 0, %s156
      %s159 = sphi 0, %s158
      %s173 = sphi 0, %s159
      %s177 = sphi 0, %s177
      %s179 = sphi 0, %s177
      %s180 = sphi 0, %s179
      %s194 = sphi 0, %s180
      %s200 = sphi 0, %s202
      %s203 = sphi 0, %s200
      %s204 = sphi 0, %s203
      %s220 = sphi 0, %s204
    $region4: #{tpu_custom_call.1} parent=1 // loop_header_branch
      %20 = sbr.rel (%p18) target = $region8
    $region5: #{tpu_custom_call.1} parent=1 // loop_body
      %s22 = ssub.s32 %s17, 1
      %s23 = ssub.s32 %s17, 2
      %s24 = sadd.s32 %s17, 1
      %s25 = ssub.s32 %s17, %s24
      %p26 = scmp.eq.s32.totalorder %s25, 0
      %s28 = sadd.s32 %s27, 1
      %s29 = scalar_select %p26, %s27, %s28
      %p32 = pneg %p26
      %p33 = scmp.eq.s32.totalorder %s17, 1
      %p34 = por %p32, %p33
      %p35 = scmp.ne.s32.totalorder %s27, %s30
      %p36 = scmp.eq.s32.totalorder %s17, 0
      %p37 = por %p35, %p36
      %p38 = scmp.ne.s32.totalorder %s27, %s30
      %p39 = scmp.eq.s32.totalorder %s22, 1
      %p40 = por %p38, %p39
      %p41 = scmp.ne.s32.totalorder %s30, %s31
      %p42 = scmp.eq.s32.totalorder %s22, 0
      %p43 = por %p41, %p42
      %p44 = scmp.ne.s32.totalorder %s30, %s31
      %p45 = scmp.eq.s32.totalorder %s23, 1
      %p46 = por %p44, %p45
      %p48 = scmp.ne.s32.totalorder %s31, %s47
      %p49 = scmp.eq.s32.totalorder %s23, 0
      %p50 = por %p48, %p49
      %s52 = sadd.s32 %s51, 1
      %p55 = scmp.eq.s32.totalorder %s17, 1
      %p56 = scmp.ne.s32.totalorder %s51, %s53
      %p57 = scmp.eq.s32.totalorder %s17, 0
      %p58 = por %p56, %p57
      %p59 = scmp.ne.s32.totalorder %s51, %s53
      %p60 = scmp.eq.s32.totalorder %s22, 1
      %p61 = por %p59, %p60
      %p62 = scmp.ne.s32.totalorder %s53, %s54
      %p63 = scmp.eq.s32.totalorder %s22, 0
      %p64 = por %p62, %p63
      %p65 = scmp.ne.s32.totalorder %s53, %s54
      %p66 = scmp.eq.s32.totalorder %s23, 1
      %p67 = por %p65, %p66
      %p69 = scmp.ne.s32.totalorder %s54, %s68
      %p70 = scmp.eq.s32.totalorder %s23, 0
      %p71 = por %p69, %p70
      %s73 = sadd.s32 %s72, 1
      %p76 = scmp.eq.s32.totalorder %s17, 1
      %p77 = scmp.ne.s32.totalorder %s72, %s74
      %p78 = scmp.eq.s32.totalorder %s17, 0
      %p79 = por %p77, %p78
      %p80 = scmp.ne.s32.totalorder %s72, %s74
      %p81 = scmp.eq.s32.totalorder %s22, 1
      %p82 = por %p80, %p81
      %p83 = scmp.ne.s32.totalorder %s74, %s75
      %p84 = scmp.eq.s32.totalorder %s22, 0
      %p85 = por %p83, %p84
      %p86 = scmp.ne.s32.totalorder %s74, %s75
      %p87 = scmp.eq.s32.totalorder %s23, 1
      %p88 = por %p86, %p87
      %p90 = scmp.ne.s32.totalorder %s75, %s89
      %p91 = scmp.eq.s32.totalorder %s23, 0
      %p92 = por %p90, %p91
      %s94 = sadd.s32 %s93, 1
      %p97 = scmp.eq.s32.totalorder %s17, 1
      %p98 = scmp.ne.s32.totalorder %s93, %s95
      %p99 = scmp.eq.s32.totalorder %s17, 0
      %p100 = por %p98, %p99
      %p101 = scmp.ne.s32.totalorder %s93, %s95
      %p102 = scmp.eq.s32.totalorder %s22, 1
      %p103 = por %p101, %p102
      %p104 = scmp.ne.s32.totalorder %s95, %s96
      %p105 = scmp.eq.s32.totalorder %s22, 0
      %p106 = por %p104, %p105
      %p107 = scmp.ne.s32.totalorder %s95, %s96
      %p108 = scmp.eq.s32.totalorder %s23, 1
      %p109 = por %p107, %p108
      %p111 = scmp.ne.s32.totalorder %s96, %s110
      %p112 = scmp.eq.s32.totalorder %s23, 0
      %p113 = por %p111, %p112
      %s115 = sadd.s32 %s114, 1
      %p118 = scmp.eq.s32.totalorder %s17, 1
      %p119 = scmp.ne.s32.totalorder %s114, %s116
      %p120 = scmp.eq.s32.totalorder %s17, 0
      %p121 = por %p119, %p120
      %p122 = scmp.ne.s32.totalorder %s114, %s116
      %p123 = scmp.eq.s32.totalorder %s22, 1
      %p124 = por %p122, %p123
      %p125 = scmp.ne.s32.totalorder %s116, %s117
      %p126 = scmp.eq.s32.totalorder %s22, 0
      %p127 = por %p125, %p126
      %p128 = scmp.ne.s32.totalorder %s116, %s117
      %p129 = scmp.eq.s32.totalorder %s23, 1
      %p130 = por %p128, %p129
      %p132 = scmp.ne.s32.totalorder %s117, %s131
      %p133 = scmp.eq.s32.totalorder %s23, 0
      %p134 = por %p132, %p133
      %s136 = sadd.s32 %s135, 1
      %p139 = scmp.eq.s32.totalorder %s17, 1
      %p140 = scmp.ne.s32.totalorder %s135, %s137
      %p141 = scmp.eq.s32.totalorder %s17, 0
      %p142 = por %p140, %p141
      %p143 = scmp.ne.s32.totalorder %s135, %s137
      %p144 = scmp.eq.s32.totalorder %s22, 1
      %p145 = por %p143, %p144
      %p146 = scmp.ne.s32.totalorder %s137, %s138
      %p147 = scmp.eq.s32.totalorder %s22, 0
      %p148 = por %p146, %p147
      %p149 = scmp.ne.s32.totalorder %s137, %s138
      %p150 = scmp.eq.s32.totalorder %s23, 1
      %p151 = por %p149, %p150
      %p153 = scmp.ne.s32.totalorder %s138, %s152
      %p154 = scmp.eq.s32.totalorder %s23, 0
      %p155 = por %p153, %p154
      %s157 = sadd.s32 %s156, 1
      %p160 = scmp.eq.s32.totalorder %s17, 1
      %p161 = scmp.ne.s32.totalorder %s156, %s158
      %p162 = scmp.eq.s32.totalorder %s17, 0
      %p163 = por %p161, %p162
      %p164 = scmp.ne.s32.totalorder %s156, %s158
      %p165 = scmp.eq.s32.totalorder %s22, 1
      %p166 = por %p164, %p165
      %p167 = scmp.ne.s32.totalorder %s158, %s159
      %p168 = scmp.eq.s32.totalorder %s22, 0
      %p169 = por %p167, %p168
      %p170 = scmp.ne.s32.totalorder %s158, %s159
      %p171 = scmp.eq.s32.totalorder %s23, 1
      %p172 = por %p170, %p171
      %p174 = scmp.ne.s32.totalorder %s159, %s173
      %p175 = scmp.eq.s32.totalorder %s23, 0
      %p176 = por %p174, %p175
      %s178 = sadd.s32 %s177, 1
      %p181 = scmp.eq.s32.totalorder %s17, 1
      %p182 = scmp.ne.s32.totalorder %s177, %s179
      %p183 = scmp.eq.s32.totalorder %s17, 0
      %p184 = por %p182, %p183
      %p185 = scmp.ne.s32.totalorder %s177, %s179
      %p186 = scmp.eq.s32.totalorder %s22, 1
      %p187 = por %p185, %p186
      %p188 = scmp.ne.s32.totalorder %s179, %s180
      %p189 = scmp.eq.s32.totalorder %s22, 0
      %p190 = por %p188, %p189
      %p191 = scmp.ne.s32.totalorder %s179, %s180
      %p192 = scmp.eq.s32.totalorder %s23, 1
      %p193 = por %p191, %p192
      %p195 = scmp.ne.s32.totalorder %s180, %s194
      %p196 = scmp.eq.s32.totalorder %s23, 0
      %p197 = por %p195, %p196
      %s198 = ssub.s32 %s17, %s24
      %p199 = scmp.eq.s32.totalorder %s198, 0
      %s201 = sadd.s32 %s200, 1
      %s202 = scalar_select %p199, %s200, %s201
      %p205 = pneg %p199
      %p206 = scmp.eq.s32.totalorder %s17, 1
      %p207 = por %p205, %p206
      %p208 = scmp.ne.s32.totalorder %s200, %s203
      %p209 = scmp.eq.s32.totalorder %s17, 0
      %p210 = por %p208, %p209
      %p211 = scmp.ne.s32.totalorder %s200, %s203
      %p212 = scmp.eq.s32.totalorder %s22, 1
      %p213 = por %p211, %p212
      %p214 = scmp.ne.s32.totalorder %s203, %s204
      %p215 = scmp.eq.s32.totalorder %s22, 0
      %p216 = por %p214, %p215
      %p217 = scmp.ne.s32.totalorder %s203, %s204
      %p218 = scmp.eq.s32.totalorder %s23, 1
      %p219 = por %p217, %p218
      %p221 = scmp.ne.s32.totalorder %s204, %s220
      %p222 = scmp.eq.s32.totalorder %s23, 0
      %p223 = por %p221, %p222
      %p224 = scmp.le.s32.totalorder 1, %s17
      %p225 = scmp.lt.s32.totalorder %s17, 3
      %p226 = pnand %p224, %p225
      %p227 = pneg %p226
      // Predicated region
      $region9: #{tpu_custom_call.1} parent=5 // pred_check
        _
      $region10: #{tpu_custom_call.1} parent=5 // pred_check_branch
        %229 = sbr.rel (%p226) target = $region12
      $region11: #{tpu_custom_call.1} parent=5 // pred_region
        %s230 = ssub.s32 %s17, 1
        // Predicated region
        $region13: #{tpu_custom_call.1} parent=11 // pred_check
          %p231 = pneg %p64
        $region14: #{tpu_custom_call.1} parent=11 // pred_check_branch
          %233 = sbr.rel (%p231) target = $region16
        $region15: #{tpu_custom_call.1} parent=11 // pred_region
          _
        $region16: #{tpu_custom_call.1} parent=11 // pred_fallthru
          _
        // Predicated region
        $region17: #{tpu_custom_call.1} parent=11 // pred_check
          %p234 = pneg %p85
        $region18: #{tpu_custom_call.1} parent=11 // pred_check_branch
          %236 = sbr.rel (%p234) target = $region20
        $region19: #{tpu_custom_call.1} parent=11 // pred_region
          _
        $region20: #{tpu_custom_call.1} parent=11 // pred_fallthru
          _
        // Predicated region
        $region21: #{tpu_custom_call.1} parent=11 // pred_check
          %p237 = pneg %p106
        $region22: #{tpu_custom_call.1} parent=11 // pred_check_branch
          %239 = sbr.rel (%p237) target = $region24
        $region23: #{tpu_custom_call.1} parent=11 // pred_region
          _
        $region24: #{tpu_custom_call.1} parent=11 // pred_fallthru
          _
        // Predicated region
        $region25: #{tpu_custom_call.1} parent=11 // pred_check
          %p240 = pneg %p127
        $region26: #{tpu_custom_call.1} parent=11 // pred_check_branch
          %242 = sbr.rel (%p240) target = $region28
        $region27: #{tpu_custom_call.1} parent=11 // pred_region
          _
        $region28: #{tpu_custom_call.1} parent=11 // pred_fallthru
          _
        // Predicated region
        $region29: #{tpu_custom_call.1} parent=11 // pred_check
          %p243 = pneg %p148
        $region30: #{tpu_custom_call.1} parent=11 // pred_check_branch
          %245 = sbr.rel (%p243) target = $region32
        $region31: #{tpu_custom_call.1} parent=11 // pred_region
          _
        $region32: #{tpu_custom_call.1} parent=11 // pred_fallthru
          _
        // Predicated region
        $region33: #{tpu_custom_call.1} parent=11 // pred_check
          %p246 = pneg %p169
        $region34: #{tpu_custom_call.1} parent=11 // pred_check_branch
          %248 = sbr.rel (%p246) target = $region36
        $region35: #{tpu_custom_call.1} parent=11 // pred_region
          _
        $region36: #{tpu_custom_call.1} parent=11 // pred_fallthru
          _
        // Predicated region
        $region37: #{tpu_custom_call.1} parent=11 // pred_check
          %p249 = pneg %p190
        $region38: #{tpu_custom_call.1} parent=11 // pred_check_branch
          %251 = sbr.rel (%p249) target = $region40
        $region39: #{tpu_custom_call.1} parent=11 // pred_region
          _
        $region40: #{tpu_custom_call.1} parent=11 // pred_fallthru
          _
      $region12: #{tpu_custom_call.1} parent=5 // pred_fallthru
        _
      %p252 = scmp.lt.s32.totalorder %s17, 2
      // Predicated region
      $region41: #{tpu_custom_call.1} parent=5 // pred_check
        %p253 = pneg %p252
      $region42: #{tpu_custom_call.1} parent=5 // pred_check_branch
        %255 = sbr.rel (%p253) target = $region44
      $region43: #{tpu_custom_call.1} parent=5 // pred_region
        // Predicated region
        $region45: #{tpu_custom_call.1} parent=43 // pred_check
          %p256 = pneg %p37
        $region46: #{tpu_custom_call.1} parent=43 // pred_check_branch
          %258 = sbr.rel (%p256) target = $region48
        $region47: #{tpu_custom_call.1} parent=43 // pred_region
          %s259 = smul.u32 2, %s17
          %p260 = scmp.lt.s32.totalorder %s259, 3
          %s261 = scalar_select %p260, %s259, 3
          %s262 = smul.addr %s261, 8
          %s263 = scalar_lea.vmem %s0, %s262
          %s264 = smul.u32 2, %s17
        $region48: #{tpu_custom_call.1} parent=43 // pred_fallthru
          _
      $region44: #{tpu_custom_call.1} parent=5 // pred_fallthru
        _
      %p265 = scmp.le.s32.totalorder 1, %s17
      %p266 = scmp.lt.s32.totalorder %s17, 3
      %p267 = pnand %p265, %p266
      %p268 = pneg %p267
      // Predicated region
      $region49: #{tpu_custom_call.1} parent=5 // pred_check
        _
      $region50: #{tpu_custom_call.1} parent=5 // pred_check_branch
        %270 = sbr.rel (%p267) target = $region52
      $region51: #{tpu_custom_call.1} parent=5 // pred_region
        %s271 = ssub.s32 %s17, 1
        %s272 = smul.u32 2, %s22
        %p273 = scmp.lt.s32.totalorder %s272, 3
        %s274 = scalar_select %p273, %s272, 3
        %s275 = smul.addr %s274, 8
        %s276 = scalar_lea.vmem %s0, %s275
        %p277 = pneg %p43
        %p278 = pneg %p40
        %p279 = pneg %p64
        %p280 = pneg %p61
        %p281 = pneg %p85
        %p282 = pneg %p82
        %p283 = pneg %p106
        %p284 = pneg %p103
        %p285 = pneg %p127
        %p286 = pneg %p124
        %p287 = pneg %p148
        %p288 = pneg %p145
        %p289 = pneg %p169
        %p290 = pneg %p166
        %p291 = pneg %p190
        %p292 = pneg %p187
        %p293 = pneg %p216
        %p294 = pneg %p213
        %s295 = sand.u32 %s203, 1
        %s296 = scalar_lea.sflag [#allocation3], %s295
        %s297 = sand.u32 %s203, 1
        %s298 = smul.addr %s297, 8
        %s299 = scalar_lea.vmem [#allocation2], %s298
        %s300 = smul.u32 2, %s22
        %p301 = scmp.lt.s32.totalorder %s300, 3
        %s302 = scalar_select %p301, %s300, 3
        %s303 = smul.addr %s302, 8
        %s304 = scalar_lea.vmem %s0, %s303
        %s305 = smul.u32 2, %s22
        %s306 = smul.u32 2, %s22
        %v308 = vld [vmem:[%s304] sm:$0xff]
        %v309 = vld [vmem:[%s304 + $0x8] sm:$0xff]
        %v310 = vlaneseq
        %v311 = vand.u32 %v310, 127
        %312 = vset.pattern.permute.xlu0 0
        %313 = vperm.xlu0 %312, %v308
        %v314 = vpop.permute.xlu0 %313
        %315 = vset.pattern.permute.xlu0 0
        %316 = vperm.xlu0 %315, %v309
        %v317 = vpop.permute.xlu0 %316
        %vm318 = vcmp.eq.s32.totalorder %v311, %v314
        %vm319 = vcmp.eq.s32.totalorder %v311, %v317
        %v320 = vsel %vm318, 1, 0
        %v321 = vsel %vm319, 1, 0
        %v322 = vcvt.s32.f32 %v320
        %v323 = vcvt.s32.f32 %v321
        %v324 = vpack.c.bf16 %v323, %v322
        %v325 = vld [vmem:[%s2] sm:$0xf]
        %v326 = vld [vmem:[%s2 + $0x4] sm:$0xf]
        %v327 = vld [vmem:[%s2 + $0x8] sm:$0xf]
        %v328 = vld [vmem:[%s2 + $0xc] sm:$0xf]
        %v329 = vld [vmem:[%s3] sm:$0x1]
        %v331 = vlaneseq
        %v332 = vshrl.u32 %v331, 7
        %v333 = vsub.s32 0, %v332
        %v334 = vrot.slane %v329, %v333
        %v340 = vunpack.c.l.b16 %v325
        %v341 = vunpack.c.l.b16 %v326
        %v342 = vunpack.c.l.b16 %v327
        %v343 = vunpack.c.l.b16 %v328
        %v344 = vpack.c.b16 %v341, %v340
        %v345 = vpack.c.b16 %v343, %v342
        %vm348 = vcmask 261120
        %v350 = vsel %vm348, %v324, 0
        %352 = vmatprep.subr.bf16.mxu0 0
        %353 = vmatpush1.bf16.msra.mxu0 %v344
        %354 = vmatprep.subr.bf16.mxu0 0
        %355 = vmatpush1.bf16.msra.mxu0 %v345
        %356 = vmatprep.subr.bf16.mxu0 0
        %357 = vmatpush1.bf16.msra.mxu0 0
        %358 = vmatprep.subr.bf16.mxu0 0
        %359 = vmatpush1.bf16.msra.mxu0 0
        %360 = vmatprep.subr.bf16.mxu0 0
        %361 = vmatpush1.bf16.msra.mxu0 0
        %362 = vmatprep.subr.bf16.mxu0 0
        %363 = vmatpush1.bf16.msra.mxu0 0
        %364 = vmatprep.subr.bf16.mxu0 0
        %365 = vmatpush1.bf16.msra.mxu0 0
        %366 = vmatprep.subr.bf16.mxu0 0
        %367 = vmatpush1.bf16.msra.mxu0 0
        %368 = vmatprep.subr.bf16.mxu0 0
        %369 = vmatpush1.bf16.msra.mxu0 0
        %370 = vmatprep.subr.bf16.mxu0 0
        %371 = vmatpush1.bf16.msra.mxu0 0
        %372 = vmatprep.subr.bf16.mxu0 0
        %373 = vmatpush1.bf16.msra.mxu0 0
        %374 = vmatprep.subr.bf16.mxu0 0
        %375 = vmatpush1.bf16.msra.mxu0 0
        %376 = vmatprep.subr.bf16.mxu0 0
        %377 = vmatpush1.bf16.msra.mxu0 0
        %378 = vmatprep.subr.bf16.mxu0 0
        %379 = vmatpush1.bf16.msra.mxu0 0
        %380 = vmatprep.subr.bf16.mxu0 0
        %381 = vmatpush1.bf16.msra.mxu0 0
        %382 = vmatprep.subr.bf16.mxu0 0
        %383 = vmatpush1.bf16.msra.mxu0 0
        %384 = vmatprep.mubr.bf16.mxu0 0
        %385 = vmatmul.mubr.bf16.gmra.mrb[0].mxu0 %v350
        %v386 = vpop.f32.mrb[0].mxu0
        %v387 = vadd.f32 %v334, %v386
        %v388 = vpop.f32.mrb[0].mxu0
        %v389 = vpop.f32.mrb[0].mxu0
        %v390 = vadd.f32 %v334, %v389
        %v391 = vpop.f32.mrb[0].mxu0
        %392 = vdwg.mxu0
        %v393 = vld [vmem:[%s1] sm:$0xff]
        %v394 = vld [vmem:[%s1 + $0x8] sm:$0xff]
        %v395 = vadd.s32 %v393, 4294967295
        %v396 = vadd.s32 %v394, 4294967295
        %vm397 = vcmp.ge.s32.totalorder %v395, 0
        %vm398 = vcmp.ge.s32.totalorder %v396, 0
        %vm399 = vcmp.lt.s32.totalorder %v395, 8
        %vm400 = vcmp.lt.s32.totalorder %v396, 8
        %vm401 = vmand %vm397, %vm399
        %vm402 = vmand %vm398, %vm400
        %vm403 = vcmp.ge.s32.totalorder %v393, 0
        %vm404 = vcmp.ge.s32.totalorder %v394, 0
        %vm405 = vcmp.lt.s32.totalorder %v393, 8
        %vm406 = vcmp.lt.s32.totalorder %v394, 8
        %vm407 = vmand %vm403, %vm405
        %vm408 = vmand %vm404, %vm406
        %v409 = vadd.s32 %v393, 1
        %v410 = vadd.s32 %v394, 1
        %vm411 = vcmp.ge.s32.totalorder %v409, 0
        %vm412 = vcmp.ge.s32.totalorder %v410, 0
        %vm413 = vcmp.lt.s32.totalorder %v409, 8
        %vm414 = vcmp.lt.s32.totalorder %v410, 8
        %vm415 = vmand %vm411, %vm413
        %vm416 = vmand %vm412, %vm414
        %v417 = vrot.slane %v387, 7
        %v418 = vrot.slane %v390, 7
        %v419 = vlaneseq
        %v420 = vshrl.u32 %v419, 7
        %vm421 = vcmp.lt.s32.totalorder %v420, 1
        %v422 = vsel %vm421, %v417, %v418
        %v423 = vsel %vm421, %v418, %v417
        %v424 = vsel %vm401, 1, 0
        %v425 = vsel %vm402, 1, 0
        %426 = vset.pattern.permute.xlu0 0
        %427 = vperm.xlu0 %426, %v424
        %v428 = vpop.permute.xlu0 %427
        %429 = vset.pattern.permute.xlu0 0
        %430 = vperm.xlu0 %429, %v425
        %v431 = vpop.permute.xlu0 %430
        %vm432 = vcmp.eq.s32.totalorder %v428, 1
        %vm433 = vcmp.eq.s32.totalorder %v431, 1
        %v434 = vsel %vm432, %v423, 0.0
        %v435 = vsel %vm433, %v422, 0.0
        %v436 = vpack.c.bf16 %v435, %v434
        %v437 = vsel %vm407, 1, 0
        %v438 = vsel %vm408, 1, 0
        %439 = vset.pattern.permute.xlu0 0
        %440 = vperm.xlu0 %439, %v437
        %v441 = vpop.permute.xlu0 %440
        %442 = vset.pattern.permute.xlu0 0
        %443 = vperm.xlu0 %442, %v438
        %v444 = vpop.permute.xlu0 %443
        %vm445 = vcmp.eq.s32.totalorder %v441, 1
        %vm446 = vcmp.eq.s32.totalorder %v444, 1
        %v447 = vsel %vm445, %v387, 0.0
        %v448 = vsel %vm446, %v390, 0.0
        %v449 = vpack.c.bf16 %v448, %v447
        %v450 = vrot.slane %v387, 1
        %v451 = vrot.slane %v390, 1
        %vm452 = vcmp.lt.s32.totalorder %v420, 7
        %v453 = vsel %vm452, %v450, %v451
        %v454 = vsel %vm452, %v451, %v450
        %v455 = vsel %vm415, 1, 0
        %v456 = vsel %vm416, 1, 0
        %457 = vset.pattern.permute.xlu0 0
        %458 = vperm.xlu0 %457, %v455
        %v459 = vpop.permute.xlu0 %458
        %460 = vset.pattern.permute.xlu0 0
        %461 = vperm.xlu0 %460, %v456
        %v462 = vpop.permute.xlu0 %461
        %vm463 = vcmp.eq.s32.totalorder %v459, 1
        %vm464 = vcmp.eq.s32.totalorder %v462, 1
        %v465 = vsel %vm463, %v453, 0.0
        %v466 = vsel %vm464, %v454, 0.0
        %v467 = vpack.c.bf16 %v466, %v465
        %469 = vrot.lane.b32.xlu0 %v449, 32
        %v470 = vpop.permute.xlu0 %469
        %472 = vrot.lane.b32.xlu0 %v467, 64
        %v473 = vpop.permute.xlu0 %472
        %v476 = vsel %vm348, %v436, %v470
        %vm477 = vcmask 523264
        %v479 = vsel %vm477, %v476, %v473
        %v480 = vld [vmem:[%s4] sm:$0xf]
        %v481 = vld [vmem:[%s4 + $0x4] sm:$0xf]
        %v482 = vld [vmem:[%s4 + $0x8] sm:$0xf]
        %v483 = vld [vmem:[%s4 + $0xc] sm:$0xf]
        %v484 = vld [vmem:[%s4 + $0x10] sm:$0xf]
        %v485 = vld [vmem:[%s4 + $0x14] sm:$0xf]
        %v486 = vld [vmem:[%s4 + $0x18] sm:$0xf]
        %v487 = vld [vmem:[%s4 + $0x1c] sm:$0xf]
        %v488 = vld [vmem:[%s4 + $0x20] sm:$0xf]
        %v489 = vld [vmem:[%s4 + $0x24] sm:$0xf]
        %v490 = vld [vmem:[%s4 + $0x28] sm:$0xf]
        %v491 = vld [vmem:[%s4 + $0x2c] sm:$0xf]
        %v492 = vld [vmem:[%s5] sm:$0x1]
        %v494 = vlaneseq
        %v495 = vshrl.u32 %v494, 7
        %v496 = vsub.s32 0, %v495
        %v497 = vrot.slane %v492, %v496
        %v511 = vunpack.c.l.b16 %v480
        %v512 = vunpack.c.l.b16 %v481
        %v513 = vunpack.c.l.b16 %v482
        %v514 = vunpack.c.l.b16 %v483
        %v515 = vunpack.c.l.b16 %v484
        %v516 = vunpack.c.l.b16 %v485
        %v517 = vunpack.c.l.b16 %v486
        %v518 = vunpack.c.l.b16 %v487
        %v519 = vunpack.c.l.b16 %v488
        %v520 = vunpack.c.l.b16 %v489
        %v521 = vunpack.c.l.b16 %v490
        %v522 = vunpack.c.l.b16 %v491
        %v523 = vpack.c.b16 %v512, %v511
        %v524 = vpack.c.b16 %v514, %v513
        %v525 = vpack.c.b16 %v516, %v515
        %v526 = vpack.c.b16 %v518, %v517
        %v527 = vpack.c.b16 %v520, %v519
        %v528 = vpack.c.b16 %v522, %v521
        %vm535 = vcmask 785408
        %v536 = vsel %vm535, %v479, 0
        %538 = vmatprep.subr.bf16.mxu0 0
        %539 = vmatpush1.bf16.msra.mxu0 %v523
        %540 = vmatprep.subr.bf16.mxu0 0
        %541 = vmatpush1.bf16.msra.mxu0 %v524
        %542 = vmatprep.subr.bf16.mxu0 0
        %543 = vmatpush1.bf16.msra.mxu0 %v525
        %544 = vmatprep.subr.bf16.mxu0 0
        %545 = vmatpush1.bf16.msra.mxu0 %v526
        %546 = vmatprep.subr.bf16.mxu0 0
        %547 = vmatpush1.bf16.msra.mxu0 %v527
        %548 = vmatprep.subr.bf16.mxu0 0
        %549 = vmatpush1.bf16.msra.mxu0 %v528
        %550 = vmatprep.subr.bf16.mxu0 0
        %551 = vmatpush1.bf16.msra.mxu0 0
        %552 = vmatprep.subr.bf16.mxu0 0
        %553 = vmatpush1.bf16.msra.mxu0 0
        %554 = vmatprep.subr.bf16.mxu0 0
        %555 = vmatpush1.bf16.msra.mxu0 0
        %556 = vmatprep.subr.bf16.mxu0 0
        %557 = vmatpush1.bf16.msra.mxu0 0
        %558 = vmatprep.subr.bf16.mxu0 0
        %559 = vmatpush1.bf16.msra.mxu0 0
        %560 = vmatprep.subr.bf16.mxu0 0
        %561 = vmatpush1.bf16.msra.mxu0 0
        %562 = vmatprep.subr.bf16.mxu0 0
        %563 = vmatpush1.bf16.msra.mxu0 0
        %564 = vmatprep.subr.bf16.mxu0 0
        %565 = vmatpush1.bf16.msra.mxu0 0
        %566 = vmatprep.subr.bf16.mxu0 0
        %567 = vmatpush1.bf16.msra.mxu0 0
        %568 = vmatprep.subr.bf16.mxu0 0
        %569 = vmatpush1.bf16.msra.mxu0 0
        %570 = vmatprep.mubr.bf16.mxu0 0
        %571 = vmatmul.mubr.bf16.gmra.mrb[0].mxu0 %v536
        %v572 = vpop.f32.mrb[0].mxu0
        %v573 = vadd.f32 %v497, %v572
        %v574 = vpop.f32.mrb[0].mxu0
        %v575 = vpop.f32.mrb[0].mxu0
        %v576 = vadd.f32 %v497, %v575
        %v577 = vpop.f32.mrb[0].mxu0
        %578 = vdwg.mxu0
        %v579 = vmax.f32 %v573, 0.0
        %v580 = vmax.f32 %v576, 0.0
        %v581 = vadd.f32 %v387, %v579
        %v582 = vadd.f32 %v390, %v580
        %v583 = vrot.slane %v581, 7
        %v584 = vrot.slane %v582, 7
        %v585 = vsel %vm421, %v583, %v584
        %v586 = vsel %vm421, %v584, %v583
        %v587 = vsel %vm432, %v586, 0.0
        %v588 = vsel %vm433, %v585, 0.0
        %v589 = vpack.c.bf16 %v588, %v587
        %v590 = vsel %vm445, %v581, 0.0
        %v591 = vsel %vm446, %v582, 0.0
        %v592 = vpack.c.bf16 %v591, %v590
        %v593 = vrot.slane %v581, 1
        %v594 = vrot.slane %v582, 1
        %v595 = vsel %vm452, %v593, %v594
        %v596 = vsel %vm452, %v594, %v593
        %v597 = vsel %vm463, %v595, 0.0
        %v598 = vsel %vm464, %v596, 0.0
        %v599 = vpack.c.bf16 %v598, %v597
        %601 = vrot.lane.b32.xlu0 %v592, 32
        %v602 = vpop.permute.xlu0 %601
        %604 = vrot.lane.b32.xlu0 %v599, 64
        %v605 = vpop.permute.xlu0 %604
        %v608 = vsel %vm348, %v589, %v602
        %v610 = vsel %vm477, %v608, %v605
        %s611 = scalar_lea.vmem %s4, 48
        %v612 = vld [vmem:[%s611] sm:$0xf]
        %v613 = vld [vmem:[%s611 + $0x4] sm:$0xf]
        %v614 = vld [vmem:[%s611 + $0x8] sm:$0xf]
        %v615 = vld [vmem:[%s611 + $0xc] sm:$0xf]
        %v616 = vld [vmem:[%s611 + $0x10] sm:$0xf]
        %v617 = vld [vmem:[%s611 + $0x14] sm:$0xf]
        %v618 = vld [vmem:[%s611 + $0x18] sm:$0xf]
        %v619 = vld [vmem:[%s611 + $0x1c] sm:$0xf]
        %v620 = vld [vmem:[%s611 + $0x20] sm:$0xf]
        %v621 = vld [vmem:[%s611 + $0x24] sm:$0xf]
        %v622 = vld [vmem:[%s611 + $0x28] sm:$0xf]
        %v623 = vld [vmem:[%s611 + $0x2c] sm:$0xf]
        %s624 = scalar_lea.vmem %s5, 1
        %v625 = vld [vmem:[%s624] sm:$0x1]
        %v627 = vlaneseq
        %v628 = vshrl.u32 %v627, 7
        %v629 = vsub.s32 0, %v628
        %v630 = vrot.slane %v625, %v629
        %v644 = vunpack.c.l.b16 %v612
        %v645 = vunpack.c.l.b16 %v613
        %v646 = vunpack.c.l.b16 %v614
        %v647 = vunpack.c.l.b16 %v615
        %v648 = vunpack.c.l.b16 %v616
        %v649 = vunpack.c.l.b16 %v617
        %v650 = vunpack.c.l.b16 %v618
        %v651 = vunpack.c.l.b16 %v619
        %v652 = vunpack.c.l.b16 %v620
        %v653 = vunpack.c.l.b16 %v621
        %v654 = vunpack.c.l.b16 %v622
        %v655 = vunpack.c.l.b16 %v623
        %v656 = vpack.c.b16 %v645, %v644
        %v657 = vpack.c.b16 %v647, %v646
        %v658 = vpack.c.b16 %v649, %v648
        %v659 = vpack.c.b16 %v651, %v650
        %v660 = vpack.c.b16 %v653, %v652
        %v661 = vpack.c.b16 %v655, %v654
        %v668 = vsel %vm535, %v610, 0
        %670 = vmatprep.subr.bf16.mxu0 0
        %671 = vmatpush1.bf16.msra.mxu0 %v656
        %672 = vmatprep.subr.bf16.mxu0 0
        %673 = vmatpush1.bf16.msra.mxu0 %v657
        %674 = vmatprep.subr.bf16.mxu0 0
        %675 = vmatpush1.bf16.msra.mxu0 %v658
        %676 = vmatprep.subr.bf16.mxu0 0
        %677 = vmatpush1.bf16.msra.mxu0 %v659
        %678 = vmatprep.subr.bf16.mxu0 0
        %679 = vmatpush1.bf16.msra.mxu0 %v660
        %680 = vmatprep.subr.bf16.mxu0 0
        %681 = vmatpush1.bf16.msra.mxu0 %v661
        %682 = vmatprep.subr.bf16.mxu0 0
        %683 = vmatpush1.bf16.msra.mxu0 0
        %684 = vmatprep.subr.bf16.mxu0 0
        %685 = vmatpush1.bf16.msra.mxu0 0
        %686 = vmatprep.subr.bf16.mxu0 0
        %687 = vmatpush1.bf16.msra.mxu0 0
        %688 = vmatprep.subr.bf16.mxu0 0
        %689 = vmatpush1.bf16.msra.mxu0 0
        %690 = vmatprep.subr.bf16.mxu0 0
        %691 = vmatpush1.bf16.msra.mxu0 0
        %692 = vmatprep.subr.bf16.mxu0 0
        %693 = vmatpush1.bf16.msra.mxu0 0
        %694 = vmatprep.subr.bf16.mxu0 0
        %695 = vmatpush1.bf16.msra.mxu0 0
        %696 = vmatprep.subr.bf16.mxu0 0
        %697 = vmatpush1.bf16.msra.mxu0 0
        %698 = vmatprep.subr.bf16.mxu0 0
        %699 = vmatpush1.bf16.msra.mxu0 0
        %700 = vmatprep.subr.bf16.mxu0 0
        %701 = vmatpush1.bf16.msra.mxu0 0
        %702 = vmatprep.mubr.bf16.mxu0 0
        %703 = vmatmul.mubr.bf16.gmra.mrb[0].mxu0 %v668
        %v704 = vpop.f32.mrb[0].mxu0
        %v705 = vadd.f32 %v630, %v704
        %v706 = vpop.f32.mrb[0].mxu0
        %v707 = vpop.f32.mrb[0].mxu0
        %v708 = vadd.f32 %v630, %v707
        %v709 = vpop.f32.mrb[0].mxu0
        %710 = vdwg.mxu0
        %v711 = vmax.f32 %v705, 0.0
        %v712 = vmax.f32 %v708, 0.0
        %v713 = vadd.f32 %v581, %v711
        %v714 = vadd.f32 %v582, %v712
        %v715 = vpack.c.bf16 %v714, %v713
        %v716 = vld [vmem:[%s6] sm:$0xf]
        %v717 = vld [vmem:[%s6 + $0x4] sm:$0xf]
        %v718 = vld [vmem:[%s6 + $0x8] sm:$0xf]
        %v719 = vld [vmem:[%s6 + $0xc] sm:$0xf]
        %v720 = vld [vmem:[%s7] sm:$0x1]
        %v722 = vlaneseq
        %v723 = vshrl.u32 %v722, 7
        %v724 = vsub.s32 0, %v723
        %v725 = vrot.slane %v720, %v724
        %v731 = vunpack.c.l.b16 %v716
        %v732 = vunpack.c.l.b16 %v717
        %v733 = vunpack.c.l.b16 %v718
        %v734 = vunpack.c.l.b16 %v719
        %v735 = vpack.c.b16 %v732, %v731
        %v736 = vpack.c.b16 %v734, %v733
        %v740 = vsel %vm348, %v715, 0
        %742 = vmatprep.subr.bf16.mxu0 0
        %743 = vmatpush1.bf16.msra.mxu0 %v735
        %744 = vmatprep.subr.bf16.mxu0 0
        %745 = vmatpush1.bf16.msra.mxu0 %v736
        %746 = vmatprep.subr.bf16.mxu0 0
        %747 = vmatpush1.bf16.msra.mxu0 0
        %748 = vmatprep.subr.bf16.mxu0 0
        %749 = vmatpush1.bf16.msra.mxu0 0
        %750 = vmatprep.subr.bf16.mxu0 0
        %751 = vmatpush1.bf16.msra.mxu0 0
        %752 = vmatprep.subr.bf16.mxu0 0
        %753 = vmatpush1.bf16.msra.mxu0 0
        %754 = vmatprep.subr.bf16.mxu0 0
        %755 = vmatpush1.bf16.msra.mxu0 0
        %756 = vmatprep.subr.bf16.mxu0 0
        %757 = vmatpush1.bf16.msra.mxu0 0
        %758 = vmatprep.subr.bf16.mxu0 0
        %759 = vmatpush1.bf16.msra.mxu0 0
        %760 = vmatprep.subr.bf16.mxu0 0
        %761 = vmatpush1.bf16.msra.mxu0 0
        %762 = vmatprep.subr.bf16.mxu0 0
        %763 = vmatpush1.bf16.msra.mxu0 0
        %764 = vmatprep.subr.bf16.mxu0 0
        %765 = vmatpush1.bf16.msra.mxu0 0
        %766 = vmatprep.subr.bf16.mxu0 0
        %767 = vmatpush1.bf16.msra.mxu0 0
        %768 = vmatprep.subr.bf16.mxu0 0
        %769 = vmatpush1.bf16.msra.mxu0 0
        %770 = vmatprep.subr.bf16.mxu0 0
        %771 = vmatpush1.bf16.msra.mxu0 0
        %772 = vmatprep.subr.bf16.mxu0 0
        %773 = vmatpush1.bf16.msra.mxu0 0
        %774 = vmatprep.mubr.bf16.mxu0 0
        %775 = vmatmul.mubr.bf16.gmra.mrb[0].mxu0 %v740
        %v776 = vpop.f32.mrb[0].mxu0
        %v777 = vadd.f32 %v725, %v776
        %v778 = vpop.f32.mrb[0].mxu0
        %v779 = vpop.f32.mrb[0].mxu0
        %v780 = vadd.f32 %v725, %v779
        %v781 = vpop.f32.mrb[0].mxu0
        %782 = vdwg.mxu0
        %v783 = vpack.c.bf16 %v780, %v777
        %v785 = vunpack.c.l.b16 %v783
        %v786 = vunpack.c.h.b16 %v783
        %v787 = vpack.c.b16 %v785, %v785
        %v788 = vpack.c.b16 %v786, %v786
        %791 = vst [vmem:[%s299] sm:$0xf] %v787
        %792 = vst [vmem:[%s299 + $0x4] sm:$0xf] %v788
        %s793 = sand.u32 %s203, 1
        %s794 = scalar_lea.sflag [#allocation3], %s793
        %s795 = sand.u32 %s203, 1
        %s796 = smul.addr %s795, 8
        %s797 = scalar_lea.vmem [#allocation2], %s796
        // Predicated region
        $region53: #{tpu_custom_call.1} parent=51 // pred_check
          %p798 = pneg %p213
        $region54: #{tpu_custom_call.1} parent=51 // pred_check_branch
          %800 = sbr.rel (%p798) target = $region56
        $region55: #{tpu_custom_call.1} parent=51 // pred_region
          %s801 = smul.u32 2, %s22
          %s803 = ssub.s32 128, 128
          %804 = vsyncadd %s794, %s803
          %s805 = smul.addr %s801, 64
          %s806 = scalar_lea.hbm %s8, %s805
          %s807 = sshll.u32 %s797, 4
          %s808 = int_to_ptr.vmem [resolvable:$true] %s807
          %813 = dma.vmem_to_hbm [thread:$0]  %s808, 128, %s806, %s794, 64, 64, 4
        $region56: #{tpu_custom_call.1} parent=51 // pred_fallthru
          _
      $region52: #{tpu_custom_call.1} parent=5 // pred_fallthru
        _
      %p814 = scmp.le.s32.totalorder 2, %s17
      // Predicated region
      $region57: #{tpu_custom_call.1} parent=5 // pred_check
        %p815 = pneg %p814
      $region58: #{tpu_custom_call.1} parent=5 // pred_check_branch
        %817 = sbr.rel (%p815) target = $region60
      $region59: #{tpu_custom_call.1} parent=5 // pred_region
        %s818 = ssub.s32 %s17, 2
        // Predicated region
        $region61: #{tpu_custom_call.1} parent=59 // pred_check
          %p819 = pneg %p219
        $region62: #{tpu_custom_call.1} parent=59 // pred_check_branch
          %821 = sbr.rel (%p819) target = $region64
        $region63: #{tpu_custom_call.1} parent=59 // pred_region
          %s822 = sand.u32 %s204, 1
          %s823 = scalar_lea.sflag [#allocation3], %s822
          %s824 = sand.u32 %s204, 1
          %s825 = smul.addr %s824, 8
          %s826 = scalar_lea.vmem [#allocation2], %s825
          %827 = dma.done %s823, 128
        $region64: #{tpu_custom_call.1} parent=59 // pred_fallthru
          _
      $region60: #{tpu_custom_call.1} parent=5 // pred_fallthru
        _
    $region6: #{tpu_custom_call.1} parent=1 // loop_footer
      %s21 = sadd.s32 1, %s17
    $region7: #{tpu_custom_call.1} parent=1 // loop_footer_branch
      %16 = sbr.rel target = $region3
    $region8: #{tpu_custom_call.1} parent=1 // loop_exit
      _
    %828 = vsyncpa [#allocation3], 1
    %s829 = scalar_lea.sflag [#allocation3], 1
    %830 = vsyncpa %s829, 1

</llo_original>
